<compile_context>
chip_gen: v7x
topology: tpu7x:2x2x1
jax: 0.10.0
libtpu: 0.0.40
codegen_flags: <defaults>
</compile_context>

<pallas_src>
import math

import jax
import jax.numpy as jnp
from jax.experimental import pallas as pl
from jax.experimental.pallas import tpu as pltpu


def _round_up(x, m):
    return ((x + m - 1) // m) * m


def _vmem_capacity_bytes():
    """Physical VMEM per TensorCore (64 MiB on v7x, 128 MiB on v5e/v6e)."""
    try:
        return int(pltpu.get_tpu_info().vmem_capacity_bytes)
    except Exception:  # query unavailable -> assume 128 MiB (v5e/v6e)
        return 128 << 20


def _encoder_kernel(x_ref, w1_ref, b1_ref, w2_ref, b2_ref, w3_ref, b3_ref,
                    out_ref, acc_ref):
    """One (TB, tk) x-tile step of the fused 3-layer MLP.

    Grid = (batch tiles, K tiles over flattened C*L).  Layer-1 partial
    products accumulate into f32 VMEM scratch; layers 2/3 and the store run
    only on the last K step.  x arrives f32 and is cast to bf16 on the VPU
    (free slot next to the MXU).
    """
    k = pl.program_id(1)

    @pl.when(k == 0)
    def _():
        acc_ref[...] = jnp.zeros_like(acc_ref)

    x = x_ref[...].astype(w1_ref.dtype)                        # f32 -> bf16
    acc_ref[...] += jnp.dot(x, w1_ref[...],
                            preferred_element_type=jnp.float32)

    @pl.when(k == pl.num_programs(1) - 1)
    def _():
        w2 = w2_ref[...]
        w3 = w3_ref[...]
        # (1, N) + (TB, N) bias adds lower to sublane-broadcast adds; no
        # materialized broadcast per grid step.
        h = jnp.maximum(acc_ref[...] + b1_ref[...], 0.0).astype(w2.dtype)
        h = jnp.dot(h, w2, preferred_element_type=jnp.float32)
        h = jnp.maximum(h + b2_ref[...], 0.0).astype(w3.dtype)
        h = jnp.dot(h, w3, preferred_element_type=jnp.float32)
        # ReLU on the mean/logvar head matches the PyTorch module
        # (mean_var = torch.relu(self.lin3(x))).
        out_ref[...] = jnp.maximum(h + b3_ref[...], 0.0).astype(out_ref.dtype)


def prepare_params(params, latent_dim, compute_dtype=jnp.bfloat16):
    """One-time transform of PyTorch-layout params for the kernel.

    - Permutes lin3 columns so outputs are [mean(0:L) | logvar(L:2L)] instead
      of interleaved (the view(-1, L, 2).unbind(-1) split becomes two
      contiguous slices).
    - Zero-pads in/hidden/output feature dims to multiples of 128
      (lane-dense loads/stores, full 128x128 MXU sub-tiles).
    - Casts weights to the MXU compute dtype (bf16); biases stay f32.
    """
    w1, b1, w2, b2, w3, b3 = params
    in_dim, hid = w1.shape
    out_dim = w3.shape[1]
    assert out_dim == 2 * latent_dim

    in_dim_p = _round_up(max(in_dim, 128), 128)
    hid_p = _round_up(max(hid, 128), 128)
    out_p = _round_up(max(out_dim, 128), 128)

    # Interleaved columns [m0, v0, m1, v1, ...] -> [m0..m_{L-1}, v0..v_{L-1}]
    perm = jnp.concatenate([jnp.arange(0, out_dim, 2),
                            jnp.arange(1, out_dim, 2)])
    w3 = w3[:, perm]
    b3 = b3[:, perm]

    def pad(a, rows, cols):
        return jnp.pad(a, ((0, rows - a.shape[0]), (0, cols - a.shape[1])))

    w1p = pad(w1, in_dim_p, hid_p).astype(compute_dtype)
    w2p = pad(w2, hid_p, hid_p).astype(compute_dtype)
    w3p = pad(w3, hid_p, out_p).astype(compute_dtype)
    b1p = pad(b1, 1, hid_p).astype(jnp.float32)
    b2p = pad(b2, 1, hid_p).astype(jnp.float32)
    b3p = pad(b3, 1, out_p).astype(jnp.float32)
    return (w1p, b1p, w2p, b2p, w3p, b3p)


def encoder_1d_forward(x, prepared_params, latent_dim, *, block_batch=None):
    """x: (B, embed_dim, seq_size) f32. Returns (mean, logvar), each (B, L) f32."""
    w1, b1, w2, b2, w3, b3 = prepared_params
    in_dim_p, hid_p = w1.shape
    out_p = w3.shape[1]

    B = x.shape[0]
    x2d = x.reshape(B, math.prod(x.shape[1:])).astype(jnp.float32)
    in_dim = x2d.shape[1]
    assert in_dim <= in_dim_p

    vmem_cap = _vmem_capacity_bytes()
    if block_batch is None:
        # v7x: 64 MiB VMEM per TC and both cores keep their own weight copy
        # under the "parallel" batch axis -> smaller batch tile than v5e/v6e.
        block_batch = 128 if vmem_cap <= (64 << 20) else 256

    # Batch tile: multiple of 16 (bf16 sublane packing) when B is small,
    # otherwise the generation-sized block for full pipelining.
    TB = block_batch if B >= block_batch else _round_up(B, 16)
    B_p = _round_up(B, TB)
    n_blocks = B_p // TB

    # K tile over the flattened (C*L) axis so resident VMEM is bounded even
    # for very long sequences (w1 is the only in_dim-scaled operand).
    tk = math.gcd(in_dim_p, 512)
    n_k = in_dim_p // tk

    pad_rows = B_p - B
    pad_cols = in_dim_p - in_dim
    if pad_rows or pad_cols:
        x2d = jnp.pad(x2d, ((0, pad_rows), (0, pad_cols)))

    # Grid-resident operands (constant index_map) never re-fetch: one buffer.
    single = pl.Buffered(1)

    def const(shape):
        return pl.BlockSpec(shape, lambda i, k: (0, 0), pipeline_mode=single)

    if n_k == 1:
        w1_spec = pl.BlockSpec((tk, hid_p), lambda i, k: (k, 0),
                               pipeline_mode=single)
    else:
        w1_spec = pl.BlockSpec((tk, hid_p), lambda i, k: (k, 0))

    # Explicit VMEM budget (scoped default is only 16 MiB v5e / 32 MiB v6e+).
    bytes_w1 = (1 if n_k == 1 else 2) * tk * hid_p * 2
    bytes_wres = (hid_p * hid_p + hid_p * out_p) * 2           # w2 + w3 (bf16)
    bytes_bias = 8 * (2 * hid_p + out_p) * 4                   # sublane-padded
    bytes_x = 2 * TB * tk * 4                                  # f32, 2 buffers
    bytes_out = 2 * TB * out_p * 2                             # bf16, 2 buffers
    bytes_acc = TB * hid_p * 4
    vmem_needed = (bytes_w1 + bytes_wres + bytes_bias + bytes_x + bytes_out
                   + bytes_acc)
    vmem_limit = int(min(max(int(vmem_needed * 1.5) + (8 << 20), 32 << 20),
                         vmem_cap))

    flops = 2 * B_p * (in_dim_p * hid_p + hid_p * hid_p + hid_p * out_p)
    bytes_accessed = (x2d.size * 4
                      + sum(p.size * p.dtype.itemsize for p in prepared_params)
                      + B_p * out_p * 2)

    mean_var = pl.pallas_call(
        _encoder_kernel,
        out_shape=jax.ShapeDtypeStruct((B_p, out_p), jnp.bfloat16),
        grid_spec=pltpu.PrefetchScalarGridSpec(
            num_scalar_prefetch=0,
            grid=(n_blocks, n_k),
            in_specs=[
                pl.BlockSpec((TB, tk), lambda i, k: (i, k)),    # x stream (f32)
                w1_spec,                                        # lin1 weight
                const((1, hid_p)),                              # lin1 bias
                const((hid_p, hid_p)), const((1, hid_p)),       # lin2
                const((hid_p, out_p)), const((1, out_p)),       # lin3
            ],
            out_specs=pl.BlockSpec((TB, out_p), lambda i, k: (i, 0)),
            scratch_shapes=[pltpu.VMEM((TB, hid_p), jnp.float32)],
        ),
        compiler_params=pltpu.CompilerParams(
            dimension_semantics=("parallel", "arbitrary"),
            vmem_limit_bytes=vmem_limit),
        cost_estimate=pl.CostEstimate(
            flops=flops, transcendentals=0, bytes_accessed=bytes_accessed),
    )(x2d, w1, b1, w2, b2, w3, b3)

    # Columns were permuted at prep time: [mean | logvar | zero pad].
    mean = mean_var[:B, :latent_dim].astype(jnp.float32)
    logvar = mean_var[:B, latent_dim:2 * latent_dim].astype(jnp.float32)
    return mean, logvar


def init_params(key, embed_dim, latent_dim, seq_size):
    """Deterministic init mirroring nn.Linear defaults.

    Weights stored as (in_features, out_features) so forward is x @ W; lin3
    output columns are interleaved [m0, v0, m1, v1, ...] exactly like the
    PyTorch module (mean_var.view(-1, L, 2).unbind(-1)).
    """
    nc = embed_dim
    hidden = int(nc * 2)
    dims = [(nc * seq_size, hidden), (hidden, hidden), (hidden, latent_dim * 2)]
    params = []
    for fan_in, fan_out in dims:
        key, kw, kb = jax.random.split(key, 3)
        bound = 1.0 / math.sqrt(fan_in)
        w = jax.random.uniform(kw, (fan_in, fan_out), jnp.float32, -bound, bound)
        bias = jax.random.uniform(kb, (1, fan_out), jnp.float32, -bound, bound)
        params.extend([w, bias])
    return tuple(params)


def reference_forward(x, params, latent_dim):
    """Plain-JAX f32 reference identical to the PyTorch forward."""
    w1, b1, w2, b2, w3, b3 = params
    b = x.shape[0]
    h = x.reshape(b, -1)
    h = jnp.maximum(h @ w1 + b1, 0.0)
    h = jnp.maximum(h @ w2 + b2, 0.0)
    mv = jnp.maximum(h @ w3 + b3, 0.0).reshape(b, latent_dim, 2)
    return mv[..., 0], mv[..., 1]


if __name__ == "__main__":
    # Small shapes consistent with the module: batch=2, embed_dim=4, seq=8, latent=4.
    batch, embed_dim, seq_size, latent_dim = 2, 4, 8, 4

    key = jax.random.PRNGKey(0)
    key, kx = jax.random.split(key)
    x = jax.random.normal(kx, (batch, embed_dim, seq_size), jnp.float32)

    params = init_params(key, embed_dim, latent_dim, seq_size)
    prepared = prepare_params(params, latent_dim)

    mean, logvar = encoder_1d_forward(x, prepared, latent_dim)
    mean = jax.block_until_ready(mean)
    logvar = jax.block_until_ready(logvar)

    ref_mean, ref_logvar = reference_forward(x, params, latent_dim)
    assert mean.shape == (batch, latent_dim)
    assert logvar.shape == (batch, latent_dim)
    # bf16 MXU operands / bf16 output with f32 accumulation -> looser tolerance.
    assert jnp.allclose(mean, ref_mean, atol=5e-2, rtol=5e-2)
    assert jnp.allclose(logvar, ref_logvar, atol=5e-2, rtol=5e-2)

    print("KERNEL_OK")
</pallas_src>

<mosaic_0001>
module attributes {stable_mosaic.version = 11 : i64} {
  func.func @_encoder_kernel(%arg0: i32, %arg1: i32, %arg2: memref<16x128xf32, #tpu.memory_space<vmem>>, %arg3: memref<128x128xbf16, #tpu.memory_space<vmem>>, %arg4: memref<1x128xf32, #tpu.memory_space<vmem>>, %arg5: memref<128x128xbf16, #tpu.memory_space<vmem>>, %arg6: memref<1x128xf32, #tpu.memory_space<vmem>>, %arg7: memref<128x128xbf16, #tpu.memory_space<vmem>>, %arg8: memref<1x128xf32, #tpu.memory_space<vmem>>, %arg9: memref<16x128xbf16, #tpu.memory_space<vmem>>, %arg10: memref<16x128xf32, #tpu.memory_space<vmem>>) attributes {dimension_semantics = [#tpu.dimension_semantics<parallel>, #tpu.dimension_semantics<arbitrary>], iteration_bounds = array<i64: 1, 1>, scalar_prefetch = 0 : i64, scratch_operands = 1 : i64, tpu.core_type = #tpu.core_type<tc>, window_params = [{transform_indices = @transform_0, window_bounds = array<i64: 16, 128>}, {pipeline_mode = #tpu.pipeline_mode<synchronous>, transform_indices = @transform_1, window_bounds = array<i64: 128, 128>}, {pipeline_mode = #tpu.pipeline_mode<synchronous>, transform_indices = @transform_2, window_bounds = array<i64: 1, 128>}, {pipeline_mode = #tpu.pipeline_mode<synchronous>, transform_indices = @transform_3, window_bounds = array<i64: 128, 128>}, {pipeline_mode = #tpu.pipeline_mode<synchronous>, transform_indices = @transform_4, window_bounds = array<i64: 1, 128>}, {pipeline_mode = #tpu.pipeline_mode<synchronous>, transform_indices = @transform_5, window_bounds = array<i64: 128, 128>}, {pipeline_mode = #tpu.pipeline_mode<synchronous>, transform_indices = @transform_6, window_bounds = array<i64: 1, 128>}, {transform_indices = @transform_7, window_bounds = array<i64: 16, 128>}]} {
    %c0_i32 = arith.constant 0 : i32
    %0 = arith.cmpi eq, %arg1, %c0_i32 : i32
    %1 = arith.extui %0 : i1 to i32
    %c0_i32_0 = arith.constant 0 : i32
    %2 = arith.cmpi ne, %1, %c0_i32_0 : i32
    scf.if %2 {
      %cst_10 = arith.constant 0.000000e+00 : f32
      %13 = vector.broadcast %cst_10 : f32 to vector<16x128xf32>
      %c0_11 = arith.constant 0 : index
      %c0_12 = arith.constant 0 : index
      %14 = vector.load %arg10[%c0_11, %c0_12] : memref<16x128xf32, #tpu.memory_space<vmem>>, vector<16x128xf32>
      tpu.vector_store %arg10[%c0_11, %c0_12], %13 {strides = array<i32>} : memref<16x128xf32, #tpu.memory_space<vmem>>, vector<16x128xf32>,
    } else {
    }
    %c0 = arith.constant 0 : index
    %c0_1 = arith.constant 0 : index
    %3 = vector.load %arg2[%c0, %c0_1] : memref<16x128xf32, #tpu.memory_space<vmem>>, vector<16x128xf32>
    %4 = arith.truncf %3 : vector<16x128xf32> to vector<16x128xbf16>
    %c0_2 = arith.constant 0 : index
    %c0_3 = arith.constant 0 : index
    %5 = vector.load %arg10[%c0_2, %c0_3] : memref<16x128xf32, #tpu.memory_space<vmem>>, vector<16x128xf32>
    %c0_4 = arith.constant 0 : index
    %c0_5 = arith.constant 0 : index
    %6 = vector.load %arg3[%c0_4, %c0_5] : memref<128x128xbf16, #tpu.memory_space<vmem>>, vector<128x128xbf16>
    %cst = arith.constant dense<0.000000e+00> : vector<16x128xf32>
    %7 = tpu.matmul %4, %6, %cst {dimension_numbers = #tpu.dot_dimension_numbers<[1], [0], [0], [1], [0, 0, 1, 1], [], []>} : vector<16x128xbf16>, vector<128x128xbf16>, vector<16x128xf32> -> vector<16x128xf32>
    %8 = arith.addf %5, %7 : vector<16x128xf32>
    %c0_6 = arith.constant 0 : index
    %c0_7 = arith.constant 0 : index
    %9 = vector.load %arg10[%c0_6, %c0_7] : memref<16x128xf32, #tpu.memory_space<vmem>>, vector<16x128xf32>
    tpu.vector_store %arg10[%c0_6, %c0_7], %8 {strides = array<i32>} : memref<16x128xf32, #tpu.memory_space<vmem>>, vector<16x128xf32>,
    %c0_i32_8 = arith.constant 0 : i32
    %10 = arith.cmpi eq, %arg1, %c0_i32_8 : i32
    %11 = arith.extui %10 : i1 to i32
    %c0_i32_9 = arith.constant 0 : i32
    %12 = arith.cmpi ne, %11, %c0_i32_9 : i32
    scf.if %12 {
      %c0_10 = arith.constant 0 : index
      %c0_11 = arith.constant 0 : index
      %13 = vector.load %arg5[%c0_10, %c0_11] : memref<128x128xbf16, #tpu.memory_space<vmem>>, vector<128x128xbf16>
      %c0_12 = arith.constant 0 : index
      %c0_13 = arith.constant 0 : index
      %14 = vector.load %arg7[%c0_12, %c0_13] : memref<128x128xbf16, #tpu.memory_space<vmem>>, vector<128x128xbf16>
      %c0_14 = arith.constant 0 : index
      %c0_15 = arith.constant 0 : index
      %15 = vector.load %arg10[%c0_14, %c0_15] : memref<16x128xf32, #tpu.memory_space<vmem>>, vector<16x128xf32>
      %c0_16 = arith.constant 0 : index
      %c0_17 = arith.constant 0 : index
      %16 = vector.load %arg4[%c0_16, %c0_17] : memref<1x128xf32, #tpu.memory_space<vmem>>, vector<1x128xf32>
      %17 = vector.broadcast %16 : vector<1x128xf32> to vector<16x128xf32>
      %18 = arith.addf %15, %17 : vector<16x128xf32>
      %cst_18 = arith.constant 0.000000e+00 : f32
      %19 = vector.broadcast %cst_18 : f32 to vector<16x128xf32>
      %20 = arith.maximumf %18, %19 : vector<16x128xf32>
      %21 = arith.truncf %20 : vector<16x128xf32> to vector<16x128xbf16>
      %cst_19 = arith.constant dense<0.000000e+00> : vector<16x128xf32>
      %22 = tpu.matmul %21, %13, %cst_19 {dimension_numbers = #tpu.dot_dimension_numbers<[1], [0], [0], [1], [0, 0, 1, 1], [], []>} : vector<16x128xbf16>, vector<128x128xbf16>, vector<16x128xf32> -> vector<16x128xf32>
      %c0_20 = arith.constant 0 : index
      %c0_21 = arith.constant 0 : index
      %23 = vector.load %arg6[%c0_20, %c0_21] : memref<1x128xf32, #tpu.memory_space<vmem>>, vector<1x128xf32>
      %24 = vector.broadcast %23 : vector<1x128xf32> to vector<16x128xf32>
      %25 = arith.addf %22, %24 : vector<16x128xf32>
      %cst_22 = arith.constant 0.000000e+00 : f32
      %26 = vector.broadcast %cst_22 : f32 to vector<16x128xf32>
      %27 = arith.maximumf %25, %26 : vector<16x128xf32>
      %28 = arith.truncf %27 : vector<16x128xf32> to vector<16x128xbf16>
      %cst_23 = arith.constant dense<0.000000e+00> : vector<16x128xf32>
      %29 = tpu.matmul %28, %14, %cst_23 {dimension_numbers = #tpu.dot_dimension_numbers<[1], [0], [0], [1], [0, 0, 1, 1], [], []>} : vector<16x128xbf16>, vector<128x128xbf16>, vector<16x128xf32> -> vector<16x128xf32>
      %c0_24 = arith.constant 0 : index
      %c0_25 = arith.constant 0 : index
      %30 = vector.load %arg8[%c0_24, %c0_25] : memref<1x128xf32, #tpu.memory_space<vmem>>, vector<1x128xf32>
      %31 = vector.broadcast %30 : vector<1x128xf32> to vector<16x128xf32>
      %32 = arith.addf %29, %31 : vector<16x128xf32>
      %cst_26 = arith.constant 0.000000e+00 : f32
      %33 = vector.broadcast %cst_26 : f32 to vector<16x128xf32>
      %34 = arith.maximumf %32, %33 : vector<16x128xf32>
      %35 = arith.truncf %34 : vector<16x128xf32> to vector<16x128xbf16>
      %c0_27 = arith.constant 0 : index
      %c0_28 = arith.constant 0 : index
      %36 = vector.load %arg9[%c0_27, %c0_28] : memref<16x128xbf16, #tpu.memory_space<vmem>>, vector<16x128xbf16>
      tpu.vector_store %arg9[%c0_27, %c0_28], %35 {strides = array<i32>} : memref<16x128xbf16, #tpu.memory_space<vmem>>, vector<16x128xbf16>,
    } else {
    }
    return
  }
  func.func @transform_0(%arg0: i32, %arg1: i32) -> (i32, i32) {
    %c0_i32 = arith.constant 0 : i32
    return %arg0, %arg1 : i32, i32
  }
  func.func @transform_1(%arg0: i32, %arg1: i32) -> (i32, i32) {
    %c0_i32 = arith.constant 0 : i32
    %c0_i32_0 = arith.constant 0 : i32
    return %arg1, %c0_i32 : i32, i32
  }
  func.func @transform_2(%arg0: i32, %arg1: i32) -> (i32, i32) {
    %c0_i32 = arith.constant 0 : i32
    %c0_i32_0 = arith.constant 0 : i32
    %c0_i32_1 = arith.constant 0 : i32
    return %c0_i32, %c0_i32_0 : i32, i32
  }
  func.func @transform_3(%arg0: i32, %arg1: i32) -> (i32, i32) {
    %c0_i32 = arith.constant 0 : i32
    %c0_i32_0 = arith.constant 0 : i32
    %c0_i32_1 = arith.constant 0 : i32
    return %c0_i32, %c0_i32_0 : i32, i32
  }
  func.func @transform_4(%arg0: i32, %arg1: i32) -> (i32, i32) {
    %c0_i32 = arith.constant 0 : i32
    %c0_i32_0 = arith.constant 0 : i32
    %c0_i32_1 = arith.constant 0 : i32
    return %c0_i32, %c0_i32_0 : i32, i32
  }
  func.func @transform_5(%arg0: i32, %arg1: i32) -> (i32, i32) {
    %c0_i32 = arith.constant 0 : i32
    %c0_i32_0 = arith.constant 0 : i32
    %c0_i32_1 = arith.constant 0 : i32
    return %c0_i32, %c0_i32_0 : i32, i32
  }
  func.func @transform_6(%arg0: i32, %arg1: i32) -> (i32, i32) {
    %c0_i32 = arith.constant 0 : i32
    %c0_i32_0 = arith.constant 0 : i32
    %c0_i32_1 = arith.constant 0 : i32
    return %c0_i32, %c0_i32_0 : i32, i32
  }
  func.func @transform_7(%arg0: i32, %arg1: i32) -> (i32, i32) {
    %c0_i32 = arith.constant 0 : i32
    %c0_i32_0 = arith.constant 0 : i32
    return %arg0, %c0_i32 : i32, i32
  }
}

</mosaic_0001>

<llo_original>
// kernel: tpu_custom_call.1
$region0: #{tpu_custom_call.1}
  #allocation0 [shape = 'u32[]', space=smem, size = 0x4, offset = 0x4, fixed_abs, tag = 'smem constant byte address 0x4 - core index']
  #allocation1 [shape = 'u32[144,128]{1,0:T(1,128)}', space=vmem, size = 0x12000, scoped, tag = 'internal scratch']
  #allocation2 [shape = 'f32[16,128]{1,0:T(8,128)}', space=vmem, size = 0x2000, scoped, tag = 'scratch operand']
  %s0 = inlined_call_operand.hbm [shape: f32[16,128], index: 0, kind: input, shape index: {}]
  %s1 = inlined_call_operand.hbm [shape: bf16[128,128], index: 1, kind: input, shape index: {}]
  %s2 = inlined_call_operand.vmem [shape: f32[1,128], index: 2, kind: input, shape index: {}]
  %s3 = inlined_call_operand.hbm [shape: bf16[128,128], index: 3, kind: input, shape index: {}]
  %s4 = inlined_call_operand.vmem [shape: f32[1,128], index: 4, kind: input, shape index: {}]
  %s5 = inlined_call_operand.hbm [shape: bf16[128,128], index: 5, kind: input, shape index: {}]
  %s6 = inlined_call_operand.vmem [shape: f32[1,128], index: 6, kind: input, shape index: {}]
  %s7 = inlined_call_operand.hbm [shape: bf16[16,128], index: 7, kind: output, shape index: {}]
  %s8 = sld [smem:[#allocation0]]
  $region62: #{tpu_custom_call.1} parent=0
    _
  %s10 = ssub.s32 1, %s8
  %s11 = scalar_select 0, %s10, %s8
  $region1: #{tpu_custom_call.1} parent=0
    #allocation3 [shape = 'u8[8192]{0}', space=vmem, size = 0x2000, scoped, tag = 'input window, operand 0, single buffered']
    #allocation4 [shape = 's32[1]{0}', space=sflag, size = 0x4, scoped, tag = 'scoped memory for tpu_custom_call.1']
    #allocation5 [shape = 's32[1]{0}', space=sflag, size = 0x4, scoped, tag = 'scoped memory for tpu_custom_call.1']
    #allocation6 [shape = 'u8[32768]{0}', space=vmem, size = 0x8000, scoped, tag = 'input window, operand 1, single buffered']
    #allocation7 [shape = 's32[1]{0}', space=sflag, size = 0x4, scoped, tag = 'scoped memory for tpu_custom_call.1']
    #allocation8 [shape = 'u8[32768]{0}', space=vmem, size = 0x8000, scoped, tag = 'input window, operand 3, single buffered']
    #allocation9 [shape = 'u8[32768]{0}', space=vmem, size = 0x8000, scoped, tag = 'input window, operand 5, single buffered']
    #allocation10 [shape = 's32[1]{0}', space=sflag, size = 0x4, scoped, tag = 'scoped memory for tpu_custom_call.1']
    #allocation11 [shape = 'u8[4096]{0}', space=vmem, size = 0x1000, scoped, tag = 'output window, operand 0, single buffered']
    %12 = vsyncpa [#allocation4], 0
    %13 = vsyncpa [#allocation7], 0
    %14 = vsyncpa [#allocation10], 0
    %15 = vsyncpa [#allocation5], 0
    // Predicated region
    $region2: #{tpu_custom_call.1} parent=1 // pred_check
      _
    $region3: #{tpu_custom_call.1} parent=1 // pred_check_branch
      %17 = sbr.rel (0) target = $region5
    $region4: #{tpu_custom_call.1} parent=1 // pred_region
      %s19 = ssub.s32 256, 256
      %20 = vsyncadd [#allocation4], %s19
      %s21 = sshll.u32 [#allocation3], 4
      %s22 = int_to_ptr.vmem [resolvable:$true] %s21
      %27 = dma.hbm_to_vmem [thread:$0]  %s0, 256, %s22, [#allocation4], 128, 128, 8
    $region5: #{tpu_custom_call.1} parent=1 // pred_fallthru
      _
    // Predicated region
    $region6: #{tpu_custom_call.1} parent=1 // pred_check
      _
    $region7: #{tpu_custom_call.1} parent=1 // pred_check_branch
      %29 = sbr.rel (0) target = $region9
    $region8: #{tpu_custom_call.1} parent=1 // pred_region
      %s31 = ssub.s32 1024, 1024
      %32 = vsyncadd [#allocation7], %s31
      %s33 = sshll.u32 [#allocation6], 4
      %s34 = int_to_ptr.vmem [resolvable:$true] %s33
      %39 = dma.hbm_to_vmem [thread:$0]  %s1, 1024, %s34, [#allocation7], 64, 64, 4
    $region9: #{tpu_custom_call.1} parent=1 // pred_fallthru
      _
    // Predicated region
    $region10: #{tpu_custom_call.1} parent=1 // pred_check
      _
    $region11: #{tpu_custom_call.1} parent=1 // pred_check_branch
      %41 = sbr.rel (0) target = $region13
    $region12: #{tpu_custom_call.1} parent=1 // pred_region
      _
    $region13: #{tpu_custom_call.1} parent=1 // pred_fallthru
      _
    // Predicated region
    $region14: #{tpu_custom_call.1} parent=1 // pred_check
      _
    $region15: #{tpu_custom_call.1} parent=1 // pred_check_branch
      %43 = sbr.rel (0) target = $region17
    $region16: #{tpu_custom_call.1} parent=1 // pred_region
      %s45 = ssub.s32 1024, 1024
      %46 = vsyncadd [#allocation7], %s45
      %s47 = sshll.u32 [#allocation8], 4
      %s48 = int_to_ptr.vmem [resolvable:$true] %s47
      %53 = dma.hbm_to_vmem [thread:$0]  %s3, 1024, %s48, [#allocation7], 64, 64, 4
    $region17: #{tpu_custom_call.1} parent=1 // pred_fallthru
      _
    // Predicated region
    $region18: #{tpu_custom_call.1} parent=1 // pred_check
      _
    $region19: #{tpu_custom_call.1} parent=1 // pred_check_branch
      %55 = sbr.rel (0) target = $region21
    $region20: #{tpu_custom_call.1} parent=1 // pred_region
      _
    $region21: #{tpu_custom_call.1} parent=1 // pred_fallthru
      _
    // Predicated region
    $region22: #{tpu_custom_call.1} parent=1 // pred_check
      _
    $region23: #{tpu_custom_call.1} parent=1 // pred_check_branch
      %57 = sbr.rel (0) target = $region25
    $region24: #{tpu_custom_call.1} parent=1 // pred_region
      %s59 = ssub.s32 1024, 1024
      %60 = vsyncadd [#allocation10], %s59
      %s61 = sshll.u32 [#allocation9], 4
      %s62 = int_to_ptr.vmem [resolvable:$true] %s61
      %67 = dma.hbm_to_vmem [thread:$0]  %s5, 1024, %s62, [#allocation10], 64, 64, 4
    $region25: #{tpu_custom_call.1} parent=1 // pred_fallthru
      _
    // Predicated region
    $region26: #{tpu_custom_call.1} parent=1 // pred_check
      _
    $region27: #{tpu_custom_call.1} parent=1 // pred_check_branch
      %69 = sbr.rel (0) target = $region29
    $region28: #{tpu_custom_call.1} parent=1 // pred_region
      _
    $region29: #{tpu_custom_call.1} parent=1 // pred_fallthru
      _
    // Predicated region
    $region30: #{tpu_custom_call.1} parent=1 // pred_check
      _
    $region31: #{tpu_custom_call.1} parent=1 // pred_check_branch
      %71 = sbr.rel (0) target = $region33
    $region32: #{tpu_custom_call.1} parent=1 // pred_region
      %72 = dma.done [#allocation4], 256
    $region33: #{tpu_custom_call.1} parent=1 // pred_fallthru
      _
    // Predicated region
    $region34: #{tpu_custom_call.1} parent=1 // pred_check
      _
    $region35: #{tpu_custom_call.1} parent=1 // pred_check_branch
      %74 = sbr.rel (0) target = $region37
    $region36: #{tpu_custom_call.1} parent=1 // pred_region
      %75 = dma.done [#allocation7], 1024
    $region37: #{tpu_custom_call.1} parent=1 // pred_fallthru
      _
    // Predicated region
    $region38: #{tpu_custom_call.1} parent=1 // pred_check
      _
    $region39: #{tpu_custom_call.1} parent=1 // pred_check_branch
      %77 = sbr.rel (0) target = $region41
    $region40: #{tpu_custom_call.1} parent=1 // pred_region
      %78 = dma.done [#allocation7], 1024
    $region41: #{tpu_custom_call.1} parent=1 // pred_fallthru
      _
    // Predicated region
    $region42: #{tpu_custom_call.1} parent=1 // pred_check
      _
    $region43: #{tpu_custom_call.1} parent=1 // pred_check_branch
      %80 = sbr.rel (0) target = $region45
    $region44: #{tpu_custom_call.1} parent=1 // pred_region
      %81 = dma.done [#allocation10], 1024
    $region45: #{tpu_custom_call.1} parent=1 // pred_fallthru
      _
    %p83 = scmp.eq.s32.totalorder 0, 0
    // Predicated region
    $region46: #{tpu_custom_call.1} parent=1 // pred_check
      %p84 = pneg %p83
    $region47: #{tpu_custom_call.1} parent=1 // pred_check_branch
      %86 = sbr.rel (%p84) target = $region49
    $region48: #{tpu_custom_call.1} parent=1 // pred_region
      %87 = vst [vmem:[#allocation2] sm:$0xff] 0.0
      %88 = vst [vmem:[#allocation2 + $0x8] sm:$0xff] 0.0
    $region49: #{tpu_custom_call.1} parent=1 // pred_fallthru
      _
    %v89 = vld [vmem:[#allocation3] sm:$0xff]
    %v90 = vld [vmem:[#allocation3 + $0x8] sm:$0xff]
    %v91 = vpack.c.bf16 %v90, %v89
    %v92 = vld [vmem:[#allocation2] sm:$0xff]
    %v93 = vld [vmem:[#allocation2 + $0x8] sm:$0xff]
    %v94 = vld [vmem:[#allocation6] sm:$0xf]
    %v95 = vld [vmem:[#allocation6 + $0x4] sm:$0xf]
    %v96 = vld [vmem:[#allocation6 + $0x8] sm:$0xf]
    %v97 = vld [vmem:[#allocation6 + $0xc] sm:$0xf]
    %v98 = vld [vmem:[#allocation6 + $0x10] sm:$0xf]
    %v99 = vld [vmem:[#allocation6 + $0x14] sm:$0xf]
    %v100 = vld [vmem:[#allocation6 + $0x18] sm:$0xf]
    %v101 = vld [vmem:[#allocation6 + $0x1c] sm:$0xf]
    %v102 = vld [vmem:[#allocation6 + $0x20] sm:$0xf]
    %v103 = vld [vmem:[#allocation6 + $0x24] sm:$0xf]
    %v104 = vld [vmem:[#allocation6 + $0x28] sm:$0xf]
    %v105 = vld [vmem:[#allocation6 + $0x2c] sm:$0xf]
    %v106 = vld [vmem:[#allocation6 + $0x30] sm:$0xf]
    %v107 = vld [vmem:[#allocation6 + $0x34] sm:$0xf]
    %v108 = vld [vmem:[#allocation6 + $0x38] sm:$0xf]
    %v109 = vld [vmem:[#allocation6 + $0x3c] sm:$0xf]
    %v126 = vunpack.c.l.b16 %v94
    %v127 = vunpack.c.l.b16 %v95
    %v128 = vunpack.c.l.b16 %v96
    %v129 = vunpack.c.l.b16 %v97
    %v130 = vunpack.c.l.b16 %v98
    %v131 = vunpack.c.l.b16 %v99
    %v132 = vunpack.c.l.b16 %v100
    %v133 = vunpack.c.l.b16 %v101
    %v134 = vunpack.c.l.b16 %v102
    %v135 = vunpack.c.l.b16 %v103
    %v136 = vunpack.c.l.b16 %v104
    %v137 = vunpack.c.l.b16 %v105
    %v138 = vunpack.c.l.b16 %v106
    %v139 = vunpack.c.l.b16 %v107
    %v140 = vunpack.c.l.b16 %v108
    %v141 = vunpack.c.l.b16 %v109
    %v142 = vpack.c.b16 %v127, %v126
    %v143 = vpack.c.b16 %v129, %v128
    %v144 = vpack.c.b16 %v131, %v130
    %v145 = vpack.c.b16 %v133, %v132
    %v146 = vpack.c.b16 %v135, %v134
    %v147 = vpack.c.b16 %v137, %v136
    %v148 = vpack.c.b16 %v139, %v138
    %v149 = vpack.c.b16 %v141, %v140
    %158 = vmatprep.subr.bf16.mxu0 0
    %159 = vmatpush1.bf16.msra.mxu0 %v142
    %160 = vmatprep.subr.bf16.mxu0 0
    %161 = vmatpush1.bf16.msra.mxu0 %v143
    %162 = vmatprep.subr.bf16.mxu0 0
    %163 = vmatpush1.bf16.msra.mxu0 %v144
    %164 = vmatprep.subr.bf16.mxu0 0
    %165 = vmatpush1.bf16.msra.mxu0 %v145
    %166 = vmatprep.subr.bf16.mxu0 0
    %167 = vmatpush1.bf16.msra.mxu0 %v146
    %168 = vmatprep.subr.bf16.mxu0 0
    %169 = vmatpush1.bf16.msra.mxu0 %v147
    %170 = vmatprep.subr.bf16.mxu0 0
    %171 = vmatpush1.bf16.msra.mxu0 %v148
    %172 = vmatprep.subr.bf16.mxu0 0
    %173 = vmatpush1.bf16.msra.mxu0 %v149
    %174 = vmatprep.subr.bf16.mxu0 0
    %175 = vmatpush1.bf16.msra.mxu0 0
    %176 = vmatprep.subr.bf16.mxu0 0
    %177 = vmatpush1.bf16.msra.mxu0 0
    %178 = vmatprep.subr.bf16.mxu0 0
    %179 = vmatpush1.bf16.msra.mxu0 0
    %180 = vmatprep.subr.bf16.mxu0 0
    %181 = vmatpush1.bf16.msra.mxu0 0
    %182 = vmatprep.subr.bf16.mxu0 0
    %183 = vmatpush1.bf16.msra.mxu0 0
    %184 = vmatprep.subr.bf16.mxu0 0
    %185 = vmatpush1.bf16.msra.mxu0 0
    %186 = vmatprep.subr.bf16.mxu0 0
    %187 = vmatpush1.bf16.msra.mxu0 0
    %188 = vmatprep.subr.bf16.mxu0 0
    %189 = vmatpush1.bf16.msra.mxu0 0
    %190 = vmatprep.mubr.bf16.mxu0 0
    %191 = vmatmul.mubr.bf16.gmra.mrb[0].mxu0 %v91
    %v192 = vpop.f32.mrb[0].mxu0
    %v193 = vadd.f32 0.0, %v192
    %v194 = vpop.f32.mrb[0].mxu0
    %v195 = vpop.f32.mrb[0].mxu0
    %v196 = vadd.f32 0.0, %v195
    %v197 = vpop.f32.mrb[0].mxu0
    %198 = vdwg.mxu0
    %v199 = vadd.f32 %v92, %v193
    %v200 = vadd.f32 %v93, %v196
    %201 = vst [vmem:[#allocation2] sm:$0xff] %v199
    %202 = vst [vmem:[#allocation2 + $0x8] sm:$0xff] %v200
    // Predicated region
    $region50: #{tpu_custom_call.1} parent=1 // pred_check
      %p203 = pneg %p83
    $region51: #{tpu_custom_call.1} parent=1 // pred_check_branch
      %205 = sbr.rel (%p203) target = $region53
    $region52: #{tpu_custom_call.1} parent=1 // pred_region
      %v206 = vld [vmem:[#allocation8] sm:$0xf]
      %v207 = vld [vmem:[#allocation8 + $0x4] sm:$0xf]
      %v208 = vld [vmem:[#allocation8 + $0x8] sm:$0xf]
      %v209 = vld [vmem:[#allocation8 + $0xc] sm:$0xf]
      %v210 = vld [vmem:[#allocation8 + $0x10] sm:$0xf]
      %v211 = vld [vmem:[#allocation8 + $0x14] sm:$0xf]
      %v212 = vld [vmem:[#allocation8 + $0x18] sm:$0xf]
      %v213 = vld [vmem:[#allocation8 + $0x1c] sm:$0xf]
      %v214 = vld [vmem:[#allocation8 + $0x20] sm:$0xf]
      %v215 = vld [vmem:[#allocation8 + $0x24] sm:$0xf]
      %v216 = vld [vmem:[#allocation8 + $0x28] sm:$0xf]
      %v217 = vld [vmem:[#allocation8 + $0x2c] sm:$0xf]
      %v218 = vld [vmem:[#allocation8 + $0x30] sm:$0xf]
      %v219 = vld [vmem:[#allocation8 + $0x34] sm:$0xf]
      %v220 = vld [vmem:[#allocation8 + $0x38] sm:$0xf]
      %v221 = vld [vmem:[#allocation8 + $0x3c] sm:$0xf]
      %v222 = vld [vmem:[#allocation9] sm:$0xf]
      %v223 = vld [vmem:[#allocation9 + $0x4] sm:$0xf]
      %v224 = vld [vmem:[#allocation9 + $0x8] sm:$0xf]
      %v225 = vld [vmem:[#allocation9 + $0xc] sm:$0xf]
      %v226 = vld [vmem:[#allocation9 + $0x10] sm:$0xf]
      %v227 = vld [vmem:[#allocation9 + $0x14] sm:$0xf]
      %v228 = vld [vmem:[#allocation9 + $0x18] sm:$0xf]
      %v229 = vld [vmem:[#allocation9 + $0x1c] sm:$0xf]
      %v230 = vld [vmem:[#allocation9 + $0x20] sm:$0xf]
      %v231 = vld [vmem:[#allocation9 + $0x24] sm:$0xf]
      %v232 = vld [vmem:[#allocation9 + $0x28] sm:$0xf]
      %v233 = vld [vmem:[#allocation9 + $0x2c] sm:$0xf]
      %v234 = vld [vmem:[#allocation9 + $0x30] sm:$0xf]
      %v235 = vld [vmem:[#allocation9 + $0x34] sm:$0xf]
      %v236 = vld [vmem:[#allocation9 + $0x38] sm:$0xf]
      %v237 = vld [vmem:[#allocation9 + $0x3c] sm:$0xf]
      %v238 = vld [vmem:[#allocation2] sm:$0xff]
      %v239 = vld [vmem:[#allocation2 + $0x8] sm:$0xff]
      %v240 = vld [vmem:[%s2] sm:$0x1]
      %v242 = vlaneseq
      %v243 = vshrl.u32 %v242, 7
      %v244 = vsub.s32 0, %v243
      %v245 = vrot.slane %v240, %v244
      %v247 = vadd.f32 %v238, %v245
      %v248 = vadd.f32 %v239, %v245
      %v249 = vmax.f32 %v247, 0.0
      %v250 = vmax.f32 %v248, 0.0
      %v251 = vpack.c.bf16 %v250, %v249
      %v252 = vld [vmem:[%s4] sm:$0x1]
      %v254 = vlaneseq
      %v255 = vshrl.u32 %v254, 7
      %v256 = vsub.s32 0, %v255
      %v257 = vrot.slane %v252, %v256
      %v275 = vunpack.c.l.b16 %v206
      %v276 = vunpack.c.l.b16 %v207
      %v277 = vunpack.c.l.b16 %v208
      %v278 = vunpack.c.l.b16 %v209
      %v279 = vunpack.c.l.b16 %v210
      %v280 = vunpack.c.l.b16 %v211
      %v281 = vunpack.c.l.b16 %v212
      %v282 = vunpack.c.l.b16 %v213
      %v283 = vunpack.c.l.b16 %v214
      %v284 = vunpack.c.l.b16 %v215
      %v285 = vunpack.c.l.b16 %v216
      %v286 = vunpack.c.l.b16 %v217
      %v287 = vunpack.c.l.b16 %v218
      %v288 = vunpack.c.l.b16 %v219
      %v289 = vunpack.c.l.b16 %v220
      %v290 = vunpack.c.l.b16 %v221
      %v291 = vpack.c.b16 %v276, %v275
      %v292 = vpack.c.b16 %v278, %v277
      %v293 = vpack.c.b16 %v280, %v279
      %v294 = vpack.c.b16 %v282, %v281
      %v295 = vpack.c.b16 %v284, %v283
      %v296 = vpack.c.b16 %v286, %v285
      %v297 = vpack.c.b16 %v288, %v287
      %v298 = vpack.c.b16 %v290, %v289
      %307 = vmatprep.subr.bf16.mxu0 0
      %308 = vmatpush1.bf16.msra.mxu0 %v291
      %309 = vmatprep.subr.bf16.mxu0 0
      %310 = vmatpush1.bf16.msra.mxu0 %v292
      %311 = vmatprep.subr.bf16.mxu0 0
      %312 = vmatpush1.bf16.msra.mxu0 %v293
      %313 = vmatprep.subr.bf16.mxu0 0
      %314 = vmatpush1.bf16.msra.mxu0 %v294
      %315 = vmatprep.subr.bf16.mxu0 0
      %316 = vmatpush1.bf16.msra.mxu0 %v295
      %317 = vmatprep.subr.bf16.mxu0 0
      %318 = vmatpush1.bf16.msra.mxu0 %v296
      %319 = vmatprep.subr.bf16.mxu0 0
      %320 = vmatpush1.bf16.msra.mxu0 %v297
      %321 = vmatprep.subr.bf16.mxu0 0
      %322 = vmatpush1.bf16.msra.mxu0 %v298
      %323 = vmatprep.subr.bf16.mxu0 0
      %324 = vmatpush1.bf16.msra.mxu0 0
      %325 = vmatprep.subr.bf16.mxu0 0
      %326 = vmatpush1.bf16.msra.mxu0 0
      %327 = vmatprep.subr.bf16.mxu0 0
      %328 = vmatpush1.bf16.msra.mxu0 0
      %329 = vmatprep.subr.bf16.mxu0 0
      %330 = vmatpush1.bf16.msra.mxu0 0
      %331 = vmatprep.subr.bf16.mxu0 0
      %332 = vmatpush1.bf16.msra.mxu0 0
      %333 = vmatprep.subr.bf16.mxu0 0
      %334 = vmatpush1.bf16.msra.mxu0 0
      %335 = vmatprep.subr.bf16.mxu0 0
      %336 = vmatpush1.bf16.msra.mxu0 0
      %337 = vmatprep.subr.bf16.mxu0 0
      %338 = vmatpush1.bf16.msra.mxu0 0
      %339 = vmatprep.mubr.bf16.mxu0 0
      %340 = vmatmul.mubr.bf16.gmra.mrb[0].mxu0 %v251
      %v341 = vpop.f32.mrb[0].mxu0
      %v342 = vadd.f32 %v257, %v341
      %v343 = vpop.f32.mrb[0].mxu0
      %v344 = vpop.f32.mrb[0].mxu0
      %v345 = vadd.f32 %v257, %v344
      %v346 = vpop.f32.mrb[0].mxu0
      %347 = vdwg.mxu0
      %v348 = vmax.f32 %v342, 0.0
      %v349 = vmax.f32 %v345, 0.0
      %v350 = vpack.c.bf16 %v349, %v348
      %v351 = vld [vmem:[%s6] sm:$0x1]
      %v353 = vlaneseq
      %v354 = vshrl.u32 %v353, 7
      %v355 = vsub.s32 0, %v354
      %v356 = vrot.slane %v351, %v355
      %v374 = vunpack.c.l.b16 %v222
      %v375 = vunpack.c.l.b16 %v223
      %v376 = vunpack.c.l.b16 %v224
      %v377 = vunpack.c.l.b16 %v225
      %v378 = vunpack.c.l.b16 %v226
      %v379 = vunpack.c.l.b16 %v227
      %v380 = vunpack.c.l.b16 %v228
      %v381 = vunpack.c.l.b16 %v229
      %v382 = vunpack.c.l.b16 %v230
      %v383 = vunpack.c.l.b16 %v231
      %v384 = vunpack.c.l.b16 %v232
      %v385 = vunpack.c.l.b16 %v233
      %v386 = vunpack.c.l.b16 %v234
      %v387 = vunpack.c.l.b16 %v235
      %v388 = vunpack.c.l.b16 %v236
      %v389 = vunpack.c.l.b16 %v237
      %v390 = vpack.c.b16 %v375, %v374
      %v391 = vpack.c.b16 %v377, %v376
      %v392 = vpack.c.b16 %v379, %v378
      %v393 = vpack.c.b16 %v381, %v380
      %v394 = vpack.c.b16 %v383, %v382
      %v395 = vpack.c.b16 %v385, %v384
      %v396 = vpack.c.b16 %v387, %v386
      %v397 = vpack.c.b16 %v389, %v388
      %406 = vmatprep.subr.bf16.mxu0 0
      %407 = vmatpush1.bf16.msra.mxu0 %v390
      %408 = vmatprep.subr.bf16.mxu0 0
      %409 = vmatpush1.bf16.msra.mxu0 %v391
      %410 = vmatprep.subr.bf16.mxu0 0
      %411 = vmatpush1.bf16.msra.mxu0 %v392
      %412 = vmatprep.subr.bf16.mxu0 0
      %413 = vmatpush1.bf16.msra.mxu0 %v393
      %414 = vmatprep.subr.bf16.mxu0 0
      %415 = vmatpush1.bf16.msra.mxu0 %v394
      %416 = vmatprep.subr.bf16.mxu0 0
      %417 = vmatpush1.bf16.msra.mxu0 %v395
      %418 = vmatprep.subr.bf16.mxu0 0
      %419 = vmatpush1.bf16.msra.mxu0 %v396
      %420 = vmatprep.subr.bf16.mxu0 0
      %421 = vmatpush1.bf16.msra.mxu0 %v397
      %422 = vmatprep.subr.bf16.mxu0 0
      %423 = vmatpush1.bf16.msra.mxu0 0
      %424 = vmatprep.subr.bf16.mxu0 0
      %425 = vmatpush1.bf16.msra.mxu0 0
      %426 = vmatprep.subr.bf16.mxu0 0
      %427 = vmatpush1.bf16.msra.mxu0 0
      %428 = vmatprep.subr.bf16.mxu0 0
      %429 = vmatpush1.bf16.msra.mxu0 0
      %430 = vmatprep.subr.bf16.mxu0 0
      %431 = vmatpush1.bf16.msra.mxu0 0
      %432 = vmatprep.subr.bf16.mxu0 0
      %433 = vmatpush1.bf16.msra.mxu0 0
      %434 = vmatprep.subr.bf16.mxu0 0
      %435 = vmatpush1.bf16.msra.mxu0 0
      %436 = vmatprep.subr.bf16.mxu0 0
      %437 = vmatpush1.bf16.msra.mxu0 0
      %438 = vmatprep.mubr.bf16.mxu0 0
      %439 = vmatmul.mubr.bf16.gmra.mrb[0].mxu0 %v350
      %v440 = vpop.f32.mrb[0].mxu0
      %v441 = vadd.f32 %v356, %v440
      %v442 = vpop.f32.mrb[0].mxu0
      %v443 = vpop.f32.mrb[0].mxu0
      %v444 = vadd.f32 %v356, %v443
      %v445 = vpop.f32.mrb[0].mxu0
      %446 = vdwg.mxu0
      %v447 = vmax.f32 %v441, 0.0
      %v448 = vmax.f32 %v444, 0.0
      %v449 = vpack.c.bf16 %v448, %v447
      %v451 = vunpack.c.l.b16 %v449
      %v452 = vunpack.c.h.b16 %v449
      %v453 = vpack.c.b16 %v451, %v451
      %v454 = vpack.c.b16 %v452, %v452
      %457 = vst [vmem:[#allocation11] sm:$0xf] %v453
      %458 = vst [vmem:[#allocation11 + $0x4] sm:$0xf] %v454
    $region53: #{tpu_custom_call.1} parent=1 // pred_fallthru
      _
    // Predicated region
    $region54: #{tpu_custom_call.1} parent=1 // pred_check
      _
    $region55: #{tpu_custom_call.1} parent=1 // pred_check_branch
      %460 = sbr.rel (0) target = $region57
    $region56: #{tpu_custom_call.1} parent=1 // pred_region
      %s462 = ssub.s32 128, 128
      %463 = vsyncadd [#allocation5], %s462
      %s464 = sshll.u32 [#allocation11], 4
      %s465 = int_to_ptr.vmem [resolvable:$true] %s464
      %470 = dma.vmem_to_hbm [thread:$0]  %s465, 128, %s7, [#allocation5], 64, 64, 4
    $region57: #{tpu_custom_call.1} parent=1 // pred_fallthru
      _
    // Predicated region
    $region58: #{tpu_custom_call.1} parent=1 // pred_check
      _
    $region59: #{tpu_custom_call.1} parent=1 // pred_check_branch
      %472 = sbr.rel (0) target = $region61
    $region60: #{tpu_custom_call.1} parent=1 // pred_region
      %473 = dma.done [#allocation5], 128
    $region61: #{tpu_custom_call.1} parent=1 // pred_fallthru
      _
    %474 = vsyncpa [#allocation4], 1
    %475 = vsyncpa [#allocation7], 1
    %476 = vsyncpa [#allocation10], 1
    %477 = vsyncpa [#allocation5], 1

</llo_original>
